<compile_context>
chip_gen: v6e
topology: v6e:2x2x1
jax: 0.10.0
libtpu: 0.0.40
codegen_flags: <defaults>
</compile_context>

<pallas_src>
import math

import jax
import jax.numpy as jnp
from jax.experimental import pallas as pl
from jax.experimental.pallas import tpu as pltpu


def _gate_kernel(init_ref, x_ref, o_ref):
    """init_ref: (G,) f32 raw gate params in SMEM.
    x_ref / o_ref: (TILE_R, TILE_L) activation tile in VMEM.

    Row-tile offsets are guaranteed (by the wrapper) to be multiples of G, so
    the group id of local row r is simply r % G.
    """
    tile_r = x_ref.shape[0]
    G = init_ref.shape[0]

    row_mod = jax.lax.broadcasted_iota(jnp.int32, (tile_r, 1), 0) % G
    p = jnp.zeros((tile_r, 1), jnp.float32)
    for g in range(G):                       # G is tiny & static: short select chain
        p = jnp.where(row_mod == g, init_ref[g], p)
    scale = jnp.exp(p)                       # EUP, f32 (matches f32 param path)

    # Multiply in f32 and round once on store (matches PyTorch/ref rounding for
    # sub-f32 activation dtypes); the extra cast is free in a mem-bound kernel.
    o_ref[...] = (x_ref[...].astype(jnp.float32) * scale).astype(o_ref.dtype)


def _vmem_capacity_bytes():
    try:
        return int(pltpu.get_tpu_info().vmem_capacity_bytes)
    except Exception:                        # query unavailable: assume v5e/v6e
        return 128 * 1024 * 1024


def _default_tile_bytes(vmem_bytes):
    """Per-x-tile byte budget.  Pipelined footprint is ~4x this (double-
    buffered input + output), capped at ~2/3 of physical VMEM:
      v7x (64 MiB VMEM)   -> 8 MiB tiles (~32 MiB footprint)
      v5e/v6e (128 MiB)   -> 8 MiB tiles (~32 MiB footprint, explicit limit)."""
    return int(max(2 << 20, min(8 << 20, (vmem_bytes * 2 // 3) // 4)))


def _choose_tiles(R, L, G, itemsize, tile_bytes):
    """Pick (TILE_R, TILE_L) respecting the (8,128) block rule, the gate's
    row%G mapping, and a preference for contiguous full-L row strips."""
    packing = max(1, 4 // itemsize)                  # f32:1, bf16:2, int8/fp8:4
    row_unit = math.lcm(8 * packing, G)              # sublane packing AND group
    strip_rows = R if R <= row_unit else row_unit
    strip_bytes = strip_rows * L * itemsize

    if strip_bytes <= tile_bytes or L <= 128:
        # Full last dim: (tile_r, L) blocks are contiguous in HBM -> one large
        # linear DMA per buffer; spend the budget on rows.
        tile_l = L
        if R <= row_unit:
            tile_r = R                               # full second-minor dim: legal
        else:
            rows = max(row_unit, tile_bytes // max(1, L * itemsize))
            tile_r = max(row_unit, (min(rows, R) // row_unit) * row_unit)
    else:
        # A single minimal row strip already exceeds the budget: split lanes.
        tile_r = strip_rows
        tile_l = max(128, (tile_bytes // (tile_r * itemsize)) // 128 * 128)

    # Guarantee >=2 blocks on a parallel axis when the shape allows it, so
    # v7x's two TensorCores both get work (an extra ~0.35 us step is noise on
    # single-TC v5e/v6e once tiles are MiB-scale).
    if R > row_unit and pl.cdiv(R, tile_r) * pl.cdiv(L, tile_l) < 2:
        tile_r = row_unit * pl.cdiv(pl.cdiv(R, row_unit), 2)

    return tile_r, tile_l


def gate_layer(x, init0, num_group=4, *, tile_bytes=None):
    """Pallas implementation of GateLayer.forward (per-group scalar gate)."""
    B, C = x.shape[0], x.shape[1]
    G = int(num_group)
    assert C % G == 0, "channels must be divisible by num_group"
    L = (C // G) * math.prod(x.shape[2:])
    R = B * G

    x2 = x.reshape(R, L)                             # contiguous view: free in XLA
    init_f32 = init0.reshape(G).astype(jnp.float32)  # keep params in f32

    itemsize = jnp.dtype(x.dtype).itemsize
    vmem_bytes = _vmem_capacity_bytes()
    if tile_bytes is None:
        tile_bytes = _default_tile_bytes(vmem_bytes)
    tile_r, tile_l = _choose_tiles(R, L, G, itemsize, tile_bytes)
    # The in-kernel row%G mapping is only valid if every row-block offset is a
    # multiple of G.
    assert tile_r % G == 0, "row tile must be a multiple of num_group"
    grid = (pl.cdiv(R, tile_r), pl.cdiv(L, tile_l))

    # Double-buffered input + output ~= 4x the x tile; add headroom but stay
    # well under physical VMEM (important on v7x's 64 MiB; also lifts v5e's
    # 16 MiB default scoped limit).
    tile_x_bytes = tile_r * tile_l * itemsize
    vmem_limit = int(min(4 * tile_x_bytes + (8 << 20), vmem_bytes * 3 // 4))

    out2 = pl.pallas_call(
        _gate_kernel,
        out_shape=jax.ShapeDtypeStruct((R, L), x.dtype),
        grid_spec=pl.GridSpec(
            grid=grid,
            in_specs=[
                pl.BlockSpec(memory_space=pltpu.MemorySpace.SMEM),     # (G,) params
                pl.BlockSpec((tile_r, tile_l), lambda i, j: (i, j)),   # x tile
            ],
            out_specs=pl.BlockSpec((tile_r, tile_l), lambda i, j: (i, j)),
        ),
        # Donate x2 as the output: the gate is elementwise and each output tile
        # is written exactly once, so in-place is safe; halves peak HBM use.
        input_output_aliases={1: 0},
        compiler_params=pltpu.CompilerParams(
            dimension_semantics=("parallel", "parallel"),
            vmem_limit_bytes=vmem_limit),
        # TODO(synk): the dominant win is not in this kernel at all -- fold the
        # 4-scalar per-group gate into the epilogue of the neighboring conv/norm
        # kernel (or leave it as a plain jnp multiply so XLA fuses it) and
        # eliminate the full read+write activation round trip.
    )(init_f32, x2)

    return out2.reshape(x.shape)


def gate_layer_ref(x, init0, num_group=4):
    """Pure-JAX reference mirroring the PyTorch forward exactly."""
    B = x.shape[0]
    xx = x.reshape(B, num_group, -1, *x.shape[2:])
    g = jnp.exp(init0.astype(jnp.float32)).reshape(
        (1, num_group) + (1,) * (xx.ndim - 2))
    return (xx.astype(jnp.float32) * g).astype(x.dtype).reshape(x.shape)


if __name__ == "__main__":
    G = 4
    key = jax.random.PRNGKey(0)
    k1, k2, k3 = jax.random.split(key, 3)

    # Parameter from __init__ is zeros (exp -> 1); use non-zero values so the
    # gate math is actually exercised.
    init0 = jnp.linspace(-0.5, 0.5, G, dtype=jnp.float32)

    # Case 1: small NCDHW activation matching the einsum 'bghxyz' layout.
    x1 = jax.random.normal(k1, (2, 8, 4, 4, 4), dtype=jnp.float32)
    out1 = jax.block_until_ready(gate_layer(x1, init0, G))
    ref1 = gate_layer_ref(x1, init0, G)
    assert out1.shape == x1.shape and out1.dtype == x1.dtype
    assert jnp.allclose(out1, ref1, atol=1e-6, rtol=1e-6), "case 1 mismatch"

    # Case 2: non-128-aligned L (=240) and non-divisible row count (R=12);
    # shrink the per-tile byte budget so a (2,2) grid and the masked
    # edge-tile path are exercised.
    x2 = jax.random.normal(k2, (3, 12, 5, 4, 4), dtype=jnp.float32)
    out2 = jax.block_until_ready(gate_layer(x2, init0, G, tile_bytes=8 * 128 * 4))
    ref2 = gate_layer_ref(x2, init0, G)
    assert out2.shape == x2.shape and out2.dtype == x2.dtype
    assert jnp.allclose(out2, ref2, atol=1e-6, rtol=1e-6), "case 2 mismatch"

    # Case 3: bf16 activation (exercises sublane packing row_unit=16 and the
    # f32-multiply / single-round store path).
    x3 = jax.random.normal(k3, (4, 16, 4, 4, 4), dtype=jnp.bfloat16)
    out3 = jax.block_until_ready(gate_layer(x3, init0, G))
    ref3 = gate_layer_ref(x3, init0, G)
    assert out3.shape == x3.shape and out3.dtype == x3.dtype
    assert jnp.allclose(out3.astype(jnp.float32), ref3.astype(jnp.float32),
                        atol=2e-2, rtol=2e-2), "case 3 mismatch"

    print("KERNEL_OK")
</pallas_src>

<mosaic_0001>
module attributes {stable_mosaic.version = 11 : i64} {
  func.func @_gate_kernel(%arg0: i32, %arg1: i32, %arg2: memref<4xf32, #tpu.memory_space<smem>>, %arg3: memref<8x128xf32, #tpu.memory_space<vmem>>, %arg4: memref<8x128xf32, #tpu.memory_space<vmem>>) attributes {dimension_semantics = [#tpu.dimension_semantics<parallel>, #tpu.dimension_semantics<parallel>], iteration_bounds = array<i64: 1, 1>, scalar_prefetch = 0 : i64, scratch_operands = 0 : i64, tpu.core_type = #tpu.core_type<tc>, window_params = [{transform_indices = @transform_0, window_bounds = array<i64: 4>}, {transform_indices = @transform_1, window_bounds = array<i64: 8, 128>}, {transform_indices = @transform_2, window_bounds = array<i64: 8, 128>}]} {
    %0 = tpu.iota {dimensions = array<i32: 0>} : vector<8x1xi32>
    %c4_i32 = arith.constant 4 : i32
    %c0_i32 = arith.constant 0 : i32
    %1 = arith.cmpi eq, %c4_i32, %c0_i32 : i32
    %c1_i32 = arith.constant 1 : i32
    %2 = arith.select %1, %c1_i32, %c4_i32 : i32
    %3 = vector.broadcast %2 : i32 to vector<8x1xi32>
    %4 = arith.remsi %0, %3 : vector<8x1xi32>
    %c0_i32_0 = arith.constant 0 : i32
    %5 = vector.broadcast %c0_i32_0 : i32 to vector<8x1xi32>
    %6 = arith.cmpi ne, %4, %5 : vector<8x1xi32>
    %c0_i32_1 = arith.constant 0 : i32
    %7 = vector.broadcast %c0_i32_1 : i32 to vector<8x1xi32>
    %8 = arith.cmpi slt, %4, %7 : vector<8x1xi32>
    %c0_i32_2 = arith.constant 0 : i32
    %9 = arith.cmpi slt, %2, %c0_i32_2 : i32
    %10 = vector.broadcast %9 : i1 to vector<8x1xi1>
    %11 = vector.broadcast %10 : vector<8x1xi1> to vector<8x1xi1>
    %12 = arith.xori %8, %11 : vector<8x1xi1>
    %13 = arith.andi %12, %6 : vector<8x1xi1>
    %14 = vector.broadcast %2 : i32 to vector<8x1xi32>
    %15 = arith.addi %4, %14 : vector<8x1xi32>
    %16 = arith.select %13, %15, %4 : vector<8x1xi1>, vector<8x1xi32>
    %cst = arith.constant 0.000000e+00 : f32
    %17 = vector.broadcast %cst : f32 to vector<8x1xf32>
    %c0_i32_3 = arith.constant 0 : i32
    %18 = vector.broadcast %c0_i32_3 : i32 to vector<8x1xi32>
    %19 = arith.cmpi eq, %16, %18 : vector<8x1xi32>
    %c0 = arith.constant 0 : index
    %20 = memref.load %arg2[%c0] : memref<4xf32, #tpu.memory_space<smem>>
    %21 = vector.broadcast %20 : f32 to vector<8x1xf32>
    %22 = arith.select %19, %21, %17 : vector<8x1xi1>, vector<8x1xf32>
    %c1_i32_4 = arith.constant 1 : i32
    %23 = vector.broadcast %c1_i32_4 : i32 to vector<8x1xi32>
    %24 = arith.cmpi eq, %16, %23 : vector<8x1xi32>
    %c1 = arith.constant 1 : index
    %25 = memref.load %arg2[%c1] : memref<4xf32, #tpu.memory_space<smem>>
    %26 = vector.broadcast %25 : f32 to vector<8x1xf32>
    %27 = arith.select %24, %26, %22 : vector<8x1xi1>, vector<8x1xf32>
    %c2_i32 = arith.constant 2 : i32
    %28 = vector.broadcast %c2_i32 : i32 to vector<8x1xi32>
    %29 = arith.cmpi eq, %16, %28 : vector<8x1xi32>
    %c2 = arith.constant 2 : index
    %30 = memref.load %arg2[%c2] : memref<4xf32, #tpu.memory_space<smem>>
    %31 = vector.broadcast %30 : f32 to vector<8x1xf32>
    %32 = arith.select %29, %31, %27 : vector<8x1xi1>, vector<8x1xf32>
    %c3_i32 = arith.constant 3 : i32
    %33 = vector.broadcast %c3_i32 : i32 to vector<8x1xi32>
    %34 = arith.cmpi eq, %16, %33 : vector<8x1xi32>
    %c3 = arith.constant 3 : index
    %35 = memref.load %arg2[%c3] : memref<4xf32, #tpu.memory_space<smem>>
    %36 = vector.broadcast %35 : f32 to vector<8x1xf32>
    %37 = arith.select %34, %36, %32 : vector<8x1xi1>, vector<8x1xf32>
    %38 = math.exp %37 : vector<8x1xf32>
    %c0_5 = arith.constant 0 : index
    %c0_6 = arith.constant 0 : index
    %39 = vector.load %arg3[%c0_5, %c0_6] : memref<8x128xf32, #tpu.memory_space<vmem>>, vector<8x128xf32>
    %40 = vector.broadcast %38 : vector<8x1xf32> to vector<8x128xf32>
    %41 = arith.mulf %39, %40 : vector<8x128xf32>
    %c0_7 = arith.constant 0 : index
    %c0_8 = arith.constant 0 : index
    %42 = vector.load %arg4[%c0_7, %c0_8] : memref<8x128xf32, #tpu.memory_space<vmem>>, vector<8x128xf32>
    tpu.vector_store %arg4[%c0_7, %c0_8], %41 {strides = array<i32>} : memref<8x128xf32, #tpu.memory_space<vmem>>, vector<8x128xf32>,
    return
  }
  func.func @transform_0(%arg0: i32, %arg1: i32) -> i32 {
    %c0_i32 = arith.constant 0 : i32
    %c0_i32_0 = arith.constant 0 : i32
    return %c0_i32 : i32
  }
  func.func @transform_1(%arg0: i32, %arg1: i32) -> (i32, i32) {
    %c0_i32 = arith.constant 0 : i32
    return %arg0, %arg1 : i32, i32
  }
  func.func @transform_2(%arg0: i32, %arg1: i32) -> (i32, i32) {
    %c0_i32 = arith.constant 0 : i32
    return %arg0, %arg1 : i32, i32
  }
}

</mosaic_0001>

<llo_original>
// kernel: tpu_custom_call.1
$region0: #{tpu_custom_call.1}
  #allocation0 [shape = 'u32[]', space=smem, size = 0x4, offset = 0x4, fixed_abs, tag = 'smem constant byte address 0x4 - core index']
  #allocation1 [shape = 'u32[144,128]{1,0:T(1,128)}', space=vmem, size = 0x12000, scoped, tag = 'internal scratch']
  %s0 = inlined_call_operand.vmem [shape: f32[4], index: 0, kind: input, shape index: {}]
  %s1 = inlined_call_operand.hbm [shape: f32[8,128], index: 1, kind: input, shape index: {}, may-alias: {1,2}]
  %s2 = inlined_call_operand.hbm [shape: f32[8,128], index: 2, kind: output, shape index: {}, may-alias: {1,2}]
  %s3 = sld [smem:[#allocation0]]
  $region26: #{tpu_custom_call.1} parent=0
    _
  %s5 = ssub.s32 1, %s3
  %s6 = scalar_select 0, %s5, %s3
  $region1: #{tpu_custom_call.1} parent=0
    #allocation2 [shape = 'u8[512]{0}', space=smem, size = 0x200, scoped, tag = 'input window, operand 0, single buffered']
    #allocation3 [shape = 's32[1]{0}', space=sflag, size = 0x4, scoped, tag = 'scoped memory for tpu_custom_call.1']
    #allocation4 [shape = 's32[1]{0}', space=sflag, size = 0x4, scoped, tag = 'scoped memory for tpu_custom_call.1']
    #allocation5 [shape = 's32[1]{0}', space=sflag, size = 0x4, scoped, tag = 'scoped memory for tpu_custom_call.1']
    #allocation6 [shape = 'u8[4096]{0}', space=vmem, size = 0x1000, scoped, tag = 'input window, operand 1, single buffered']
    #allocation7 [shape = 'u8[4096]{0}', space=vmem, size = 0x1000, scoped, tag = 'output window, operand 0, single buffered']
    %7 = vsyncpa [#allocation5], 0
    %8 = vsyncpa [#allocation3], 0
    %9 = vsyncpa [#allocation4], 0
    // Predicated region
    $region2: #{tpu_custom_call.1} parent=1 // pred_check
      _
    $region3: #{tpu_custom_call.1} parent=1 // pred_check_branch
      %11 = sbr.rel (0) target = $region5
    $region4: #{tpu_custom_call.1} parent=1 // pred_region
      %s13 = ssub.s32 16, 16
      %14 = vsyncadd [#allocation5], %s13
      %s16 = sshll.u32 %s0, 4
      %s17 = int_to_ptr.vmem [resolvable:$true] %s16
      %19 = dma.vmem_to_smem %s17, 16, [#allocation2], [#allocation5]
    $region5: #{tpu_custom_call.1} parent=1 // pred_fallthru
      _
    // Predicated region
    $region6: #{tpu_custom_call.1} parent=1 // pred_check
      _
    $region7: #{tpu_custom_call.1} parent=1 // pred_check_branch
      %21 = sbr.rel (0) target = $region9
    $region8: #{tpu_custom_call.1} parent=1 // pred_region
      %s23 = ssub.s32 128, 128
      %24 = vsyncadd [#allocation3], %s23
      %s26 = sshll.u32 [#allocation6], 4
      %s27 = int_to_ptr.vmem [resolvable:$true] %s26
      %29 = dma.hbm_to_vmem [thread:$0]  %s1, 128, %s27, [#allocation3]
    $region9: #{tpu_custom_call.1} parent=1 // pred_fallthru
      _
    // Predicated region
    $region10: #{tpu_custom_call.1} parent=1 // pred_check
      _
    $region11: #{tpu_custom_call.1} parent=1 // pred_check_branch
      %31 = sbr.rel (0) target = $region13
    $region12: #{tpu_custom_call.1} parent=1 // pred_region
      %32 = dma.done [#allocation5], 16
    $region13: #{tpu_custom_call.1} parent=1 // pred_fallthru
      _
    // Predicated region
    $region14: #{tpu_custom_call.1} parent=1 // pred_check
      _
    $region15: #{tpu_custom_call.1} parent=1 // pred_check_branch
      %34 = sbr.rel (0) target = $region17
    $region16: #{tpu_custom_call.1} parent=1 // pred_region
      %35 = dma.done [#allocation3], 128
    $region17: #{tpu_custom_call.1} parent=1 // pred_fallthru
      _
    %36 = sfence
    %v37 = vlaneseq
    %v38 = vshrl.u32 %v37, 7
    %vm39 = vcmp.lt.s32.totalorder %v38, 0
    %v40 = vsub.s32 0, %v38
    %v41 = vsel %vm39, %v40, %v38
    %v42 = vshrl.u32 %v41, 2
    %v43 = vand.u32 %v41, 3
    %v44 = vsub.s32 0, %v43
    %v45 = vsel %vm39, %v44, %v43
    %vm46 = vcmp.ne.s32.totalorder %v45, 0
    %vm47 = vcmp.lt.s32.totalorder %v45, 0
    %vm48 = vmand %vm47, %vm46
    %v49 = vadd.s32 %v45, 4
    %v50 = vsel %vm48, %v49, %v45
    %vm51 = vcmp.eq.s32.totalorder %v50, 0
    %s52 = sld [smem:[#allocation2]]
    %v53 = vstv %s52
    %v54 = vsel %vm51, %v53, 0.0
    %vm55 = vcmp.eq.s32.totalorder %v50, 1
    %s56 = sld [smem:[#allocation2 + $0x1]]
    %v57 = vstv %s56
    %v58 = vsel %vm55, %v57, %v54
    %vm59 = vcmp.eq.s32.totalorder %v50, 2
    %s60 = sld [smem:[#allocation2 + $0x2]]
    %v61 = vstv %s60
    %v62 = vsel %vm59, %v61, %v58
    %vm63 = vcmp.eq.s32.totalorder %v50, 3
    %s64 = sld [smem:[#allocation2 + $0x3]]
    %v65 = vstv %s64
    %v66 = vsel %vm63, %v65, %v62
    %v67 = vmul.f32 %v66, 1.442695
    %v68 = vpow.pop %v67
    %v69 = vld [vmem:[#allocation6] sm:$0xff]
    %v70 = vmul.f32 %v69, %v68
    %71 = vst [vmem:[#allocation7] sm:$0xff] %v70
    // Predicated region
    $region18: #{tpu_custom_call.1} parent=1 // pred_check
      _
    $region19: #{tpu_custom_call.1} parent=1 // pred_check_branch
      %73 = sbr.rel (0) target = $region21
    $region20: #{tpu_custom_call.1} parent=1 // pred_region
      %s75 = ssub.s32 128, 128
      %76 = vsyncadd [#allocation4], %s75
      %s78 = sshll.u32 [#allocation7], 4
      %s79 = int_to_ptr.vmem [resolvable:$true] %s78
      %81 = dma.vmem_to_hbm [thread:$0]  %s79, 128, %s2, [#allocation4]
    $region21: #{tpu_custom_call.1} parent=1 // pred_fallthru
      _
    // Predicated region
    $region22: #{tpu_custom_call.1} parent=1 // pred_check
      _
    $region23: #{tpu_custom_call.1} parent=1 // pred_check_branch
      %83 = sbr.rel (0) target = $region25
    $region24: #{tpu_custom_call.1} parent=1 // pred_region
      %84 = dma.done [#allocation4], 128
    $region25: #{tpu_custom_call.1} parent=1 // pred_fallthru
      _
    %85 = vsyncpa [#allocation3], 1
    %86 = vsyncpa [#allocation4], 1
    %87 = vsyncpa [#allocation5], 1

</llo_original>
